<compile_context>
chip_gen: v7x
topology: tpu7x:2x2x1
jax: 0.10.0
libtpu: 0.0.40
codegen_flags: <defaults>
</compile_context>

<pallas_src>
import jax
import jax.numpy as jnp
from jax.experimental import pallas as pl
from jax.experimental.pallas import tpu as pltpu


def _round_up(a, m):
    return ((a + m - 1) // m) * m


def encoder_mean_kernel(frames_ref, pool_ref, w_in_ref, b_in_ref,
                        w_ff1_ref, b_ff1_ref, w_ff2_ref, b_ff2_ref,
                        out_ref):
    # frames_ref: (rows, F)      bf16  -- this step's sequences, flattened to rows
    # pool_ref:   (g_out, rows)  bf16  -- block-diagonal 1/T mean-pooling matrix
    # weights bf16, biases fp32; all MXU accumulation is fp32.
    frames = frames_ref[...]                                             # bf16
    pool = pool_ref[...]                                                 # bf16

    # frame projection -> hidden (bf16 MXU, fp32 accumulate)
    h = jnp.dot(frames, w_in_ref[...],
                preferred_element_type=jnp.float32)                      # (rows, D) f32
    h = jax.nn.gelu(h + b_in_ref[...])                                   # f32 VPU/EUP
    h_b = h.astype(jnp.bfloat16)

    # per-batch sequence mean of the residual branch, folded into the MXU
    pooled_h = jnp.dot(pool, h_b,
                       preferred_element_type=jnp.float32)               # (g_out, D)

    # FFN expansion + GELU, then pool BEFORE the contraction matmul
    ff = jnp.dot(h_b, w_ff1_ref[...],
                 preferred_element_type=jnp.float32)                     # (rows, H)
    g_b = jax.nn.gelu(ff + b_ff1_ref[...]).astype(jnp.bfloat16)
    pooled_g = jnp.dot(pool, g_b,
                       preferred_element_type=jnp.float32)               # (g_out, H)

    # contraction now runs on g_out rows instead of rows=BB*T rows
    out_ref[...] = (pooled_h
                    + jnp.dot(pooled_g.astype(jnp.bfloat16), w_ff2_ref[...],
                              preferred_element_type=jnp.float32)
                    + b_ff2_ref[...])                                    # (g_out, D)


def prepare_params(params):
    # One-time bf16 conversion of the matmul weights (avoid per-call .astype on
    # the host graph); biases stay fp32.
    return {
        "w_in": params["w_in"].astype(jnp.bfloat16),
        "b_in": params["b_in"],
        "w_ff1": params["w_ff1"].astype(jnp.bfloat16),
        "b_ff1": params["b_ff1"],
        "w_ff2": params["w_ff2"].astype(jnp.bfloat16),
        "b_ff2": params["b_ff2"],
    }


def pretrained_speech_model_forward(x, kparams, frame_len, batches_per_step=8):
    """x: [B, L] float32 waveform. Returns [B, D] mean-pooled features."""
    B, L = x.shape
    F = frame_len
    assert L % F == 0
    T = L // F
    D = kparams["w_in"].shape[1]
    H = kparams["w_ff1"].shape[1]

    if B <= 8:
        # Small-batch path: one grid step over all sequences; frame rows padded
        # only to the sublane quantum (8) instead of 8*T.
        n_steps = 1
        g_out = 8                               # (8, D) sublane/lane-dense output
        rows_step = _round_up(B * T, 8)
    else:
        bb = batches_per_step                   # multiple of 8
        assert bb % 8 == 0
        n_steps = (B + bb - 1) // bb
        g_out = bb
        rows_step = bb * T

    b_pad = n_steps * g_out
    rows_total = n_steps * rows_step

    # non-overlapping framing -> row-dense bf16 matmul LHS
    frames = x.reshape(B * T, F)
    if rows_total != B * T:
        frames = jnp.pad(frames, ((0, rows_total - B * T), (0, 0)))
    frames = frames.astype(jnp.bfloat16)

    # block-diagonal mean-pooling matrix for one grid step (bf16; 1/T exact for
    # power-of-two T).  Rows for padded batches / padded frame rows are zero.
    pool = jnp.repeat(jnp.eye(g_out, dtype=jnp.float32), T, axis=1) / T
    pool = pool[:, :rows_step].astype(jnp.bfloat16)        # (g_out, rows_step)

    out = pl.pallas_call(
        encoder_mean_kernel,
        out_shape=jax.ShapeDtypeStruct((b_pad, D), jnp.float32),
        grid_spec=pltpu.PrefetchScalarGridSpec(
            num_scalar_prefetch=0,
            grid=(n_steps,),
            in_specs=[
                pl.BlockSpec((rows_step, F), lambda i: (i, 0)),     # frames (bf16, streamed)
                pl.BlockSpec((g_out, rows_step), lambda i: (0, 0)),  # pool   (bf16, const)
                pl.BlockSpec((F, D), lambda i: (0, 0)),             # w_in   (bf16)
                pl.BlockSpec((1, D), lambda i: (0, 0)),             # b_in   (f32)
                pl.BlockSpec((D, H), lambda i: (0, 0)),             # w_ff1  (bf16)
                pl.BlockSpec((1, H), lambda i: (0, 0)),             # b_ff1  (f32)
                pl.BlockSpec((H, D), lambda i: (0, 0)),             # w_ff2  (bf16)
                pl.BlockSpec((1, D), lambda i: (0, 0)),             # b_ff2  (f32)
            ],
            out_specs=pl.BlockSpec((g_out, D), lambda i: (i, 0)),   # dense (8,128) store
        ),
        compiler_params=pltpu.CompilerParams(
            dimension_semantics=("parallel",)),
    )(frames, pool, kparams["w_in"], kparams["b_in"],
      kparams["w_ff1"], kparams["b_ff1"], kparams["w_ff2"], kparams["b_ff2"])

    return out[:B]


def reference_forward(x, params, frame_len):
    # Pure fp32 JAX reference (matches the synthetic-encoder module semantics).
    B, L = x.shape
    F = frame_len
    T = L // F
    frames = x.reshape(B, T, F)
    h = jax.nn.gelu(frames @ params["w_in"] + params["b_in"])
    ff = jax.nn.gelu(h @ params["w_ff1"] + params["b_ff1"])
    last_hidden = h + ff @ params["w_ff2"] + params["b_ff2"]
    return last_hidden.mean(axis=1)


def init_params(key, frame_len, hidden, ffn):
    k1, k2, k3 = jax.random.split(key, 3)
    return {
        "w_in":  (jax.random.normal(k1, (frame_len, hidden), jnp.float32)
                  / jnp.sqrt(frame_len)),
        "b_in":  jnp.zeros((1, hidden), jnp.float32),
        "w_ff1": (jax.random.normal(k2, (hidden, ffn), jnp.float32)
                  / jnp.sqrt(hidden)),
        "b_ff1": jnp.zeros((1, ffn), jnp.float32),
        "w_ff2": (jax.random.normal(k3, (ffn, hidden), jnp.float32)
                  / jnp.sqrt(ffn)),
        "b_ff2": jnp.zeros((1, hidden), jnp.float32),
    }


if __name__ == "__main__":
    # small shapes: batch=2, waveform length 2048, frame_len=128 -> T=16 frames,
    # hidden D=128 (final_feat_dim), FFN H=256.
    B, L = 2, 2048
    FRAME, D, H = 128, 128, 256

    key = jax.random.PRNGKey(0)
    k_x, k_p = jax.random.split(key)
    x = jax.random.normal(k_x, (B, L), jnp.float32)
    params = init_params(k_p, FRAME, D, H)
    kparams = prepare_params(params)          # one-time bf16 weight conversion

    out = pretrained_speech_model_forward(x, kparams, FRAME)
    out = jax.block_until_ready(out)

    ref = reference_forward(x, params, FRAME)
    assert out.shape == (B, D)
    # bf16 matmul operands with fp32 accumulation -> loosened tolerance vs fp32 ref
    assert jnp.allclose(out, ref, atol=2e-2, rtol=2e-2)
    print("KERNEL_OK")
</pallas_src>

<mosaic_0001>
module attributes {stable_mosaic.version = 11 : i64} {
  func.func @encoder_mean_kernel(%arg0: i32, %arg1: memref<32x128xbf16, #tpu.memory_space<vmem>>, %arg2: memref<8x32xbf16, #tpu.memory_space<vmem>>, %arg3: memref<128x128xbf16, #tpu.memory_space<vmem>>, %arg4: memref<1x128xf32, #tpu.memory_space<vmem>>, %arg5: memref<128x256xbf16, #tpu.memory_space<vmem>>, %arg6: memref<1x256xf32, #tpu.memory_space<vmem>>, %arg7: memref<256x128xbf16, #tpu.memory_space<vmem>>, %arg8: memref<1x128xf32, #tpu.memory_space<vmem>>, %arg9: memref<8x128xf32, #tpu.memory_space<vmem>>) attributes {dimension_semantics = [#tpu.dimension_semantics<parallel>], iteration_bounds = array<i64: 1>, scalar_prefetch = 0 : i64, scratch_operands = 0 : i64, tpu.core_type = #tpu.core_type<tc>, window_params = [{transform_indices = @transform_0, window_bounds = array<i64: 32, 128>}, {pipeline_mode = #tpu.pipeline_mode<synchronous>, transform_indices = @transform_1, window_bounds = array<i64: 8, 32>}, {pipeline_mode = #tpu.pipeline_mode<synchronous>, transform_indices = @transform_2, window_bounds = array<i64: 128, 128>}, {pipeline_mode = #tpu.pipeline_mode<synchronous>, transform_indices = @transform_3, window_bounds = array<i64: 1, 128>}, {pipeline_mode = #tpu.pipeline_mode<synchronous>, transform_indices = @transform_4, window_bounds = array<i64: 128, 256>}, {pipeline_mode = #tpu.pipeline_mode<synchronous>, transform_indices = @transform_5, window_bounds = array<i64: 1, 256>}, {pipeline_mode = #tpu.pipeline_mode<synchronous>, transform_indices = @transform_6, window_bounds = array<i64: 256, 128>}, {pipeline_mode = #tpu.pipeline_mode<synchronous>, transform_indices = @transform_7, window_bounds = array<i64: 1, 128>}, {transform_indices = @transform_8, window_bounds = array<i64: 8, 128>}]} {
    %c0 = arith.constant 0 : index
    %c0_0 = arith.constant 0 : index
    %0 = vector.load %arg1[%c0, %c0_0] : memref<32x128xbf16, #tpu.memory_space<vmem>>, vector<32x128xbf16>
    %c0_1 = arith.constant 0 : index
    %c0_2 = arith.constant 0 : index
    %1 = vector.load %arg2[%c0_1, %c0_2] : memref<8x32xbf16, #tpu.memory_space<vmem>>, vector<8x32xbf16>
    %c0_3 = arith.constant 0 : index
    %c0_4 = arith.constant 0 : index
    %2 = vector.load %arg3[%c0_3, %c0_4] : memref<128x128xbf16, #tpu.memory_space<vmem>>, vector<128x128xbf16>
    %cst = arith.constant dense<0.000000e+00> : vector<32x128xf32>
    %3 = tpu.matmul %0, %2, %cst {dimension_numbers = #tpu.dot_dimension_numbers<[1], [0], [0], [1], [0, 0, 1, 1], [], []>} : vector<32x128xbf16>, vector<128x128xbf16>, vector<32x128xf32> -> vector<32x128xf32>
    %c0_5 = arith.constant 0 : index
    %c0_6 = arith.constant 0 : index
    %4 = vector.load %arg4[%c0_5, %c0_6] : memref<1x128xf32, #tpu.memory_space<vmem>>, vector<1x128xf32>
    %5 = vector.broadcast %4 : vector<1x128xf32> to vector<32x128xf32>
    %6 = arith.addf %3, %5 : vector<32x128xf32>
    %7 = arith.mulf %6, %6 : vector<32x128xf32>
    %8 = arith.mulf %6, %7 : vector<32x128xf32>
    %cst_7 = arith.constant 4.471500e-02 : f32
    %9 = vector.broadcast %cst_7 : f32 to vector<32x128xf32>
    %10 = arith.mulf %9, %8 : vector<32x128xf32>
    %11 = arith.addf %6, %10 : vector<32x128xf32>
    %cst_8 = arith.constant 0.797884583 : f32
    %12 = vector.broadcast %cst_8 : f32 to vector<32x128xf32>
    %13 = arith.mulf %12, %11 : vector<32x128xf32>
    %14 = math.tanh %13 : vector<32x128xf32>
    %cst_9 = arith.constant 1.000000e+00 : f32
    %15 = vector.broadcast %cst_9 : f32 to vector<32x128xf32>
    %16 = arith.addf %15, %14 : vector<32x128xf32>
    %cst_10 = arith.constant 5.000000e-01 : f32
    %17 = vector.broadcast %cst_10 : f32 to vector<32x128xf32>
    %18 = arith.mulf %17, %16 : vector<32x128xf32>
    %19 = arith.mulf %6, %18 : vector<32x128xf32>
    %20 = arith.truncf %19 : vector<32x128xf32> to vector<32x128xbf16>
    %cst_11 = arith.constant dense<0.000000e+00> : vector<8x128xf32>
    %21 = tpu.matmul %1, %20, %cst_11 {dimension_numbers = #tpu.dot_dimension_numbers<[1], [0], [0], [1], [0, 0, 1, 1], [], []>} : vector<8x32xbf16>, vector<32x128xbf16>, vector<8x128xf32> -> vector<8x128xf32>
    %c0_12 = arith.constant 0 : index
    %c0_13 = arith.constant 0 : index
    %22 = vector.load %arg5[%c0_12, %c0_13] : memref<128x256xbf16, #tpu.memory_space<vmem>>, vector<128x256xbf16>
    %cst_14 = arith.constant dense<0.000000e+00> : vector<32x256xf32>
    %23 = tpu.matmul %20, %22, %cst_14 {dimension_numbers = #tpu.dot_dimension_numbers<[1], [0], [0], [1], [0, 0, 1, 1], [], []>} : vector<32x128xbf16>, vector<128x256xbf16>, vector<32x256xf32> -> vector<32x256xf32>
    %c0_15 = arith.constant 0 : index
    %c0_16 = arith.constant 0 : index
    %24 = vector.load %arg6[%c0_15, %c0_16] : memref<1x256xf32, #tpu.memory_space<vmem>>, vector<1x256xf32>
    %25 = vector.broadcast %24 : vector<1x256xf32> to vector<32x256xf32>
    %26 = arith.addf %23, %25 : vector<32x256xf32>
    %27 = arith.mulf %26, %26 : vector<32x256xf32>
    %28 = arith.mulf %26, %27 : vector<32x256xf32>
    %cst_17 = arith.constant 4.471500e-02 : f32
    %29 = vector.broadcast %cst_17 : f32 to vector<32x256xf32>
    %30 = arith.mulf %29, %28 : vector<32x256xf32>
    %31 = arith.addf %26, %30 : vector<32x256xf32>
    %cst_18 = arith.constant 0.797884583 : f32
    %32 = vector.broadcast %cst_18 : f32 to vector<32x256xf32>
    %33 = arith.mulf %32, %31 : vector<32x256xf32>
    %34 = math.tanh %33 : vector<32x256xf32>
    %cst_19 = arith.constant 1.000000e+00 : f32
    %35 = vector.broadcast %cst_19 : f32 to vector<32x256xf32>
    %36 = arith.addf %35, %34 : vector<32x256xf32>
    %cst_20 = arith.constant 5.000000e-01 : f32
    %37 = vector.broadcast %cst_20 : f32 to vector<32x256xf32>
    %38 = arith.mulf %37, %36 : vector<32x256xf32>
    %39 = arith.mulf %26, %38 : vector<32x256xf32>
    %40 = arith.truncf %39 : vector<32x256xf32> to vector<32x256xbf16>
    %cst_21 = arith.constant dense<0.000000e+00> : vector<8x256xf32>
    %41 = tpu.matmul %1, %40, %cst_21 {dimension_numbers = #tpu.dot_dimension_numbers<[1], [0], [0], [1], [0, 0, 1, 1], [], []>} : vector<8x32xbf16>, vector<32x256xbf16>, vector<8x256xf32> -> vector<8x256xf32>
    %42 = arith.truncf %41 : vector<8x256xf32> to vector<8x256xbf16>
    %c0_22 = arith.constant 0 : index
    %c0_23 = arith.constant 0 : index
    %43 = vector.load %arg7[%c0_22, %c0_23] : memref<256x128xbf16, #tpu.memory_space<vmem>>, vector<256x128xbf16>
    %cst_24 = arith.constant dense<0.000000e+00> : vector<8x128xf32>
    %44 = tpu.matmul %42, %43, %cst_24 {dimension_numbers = #tpu.dot_dimension_numbers<[1], [0], [0], [1], [0, 0, 1, 1], [], []>} : vector<8x256xbf16>, vector<256x128xbf16>, vector<8x128xf32> -> vector<8x128xf32>
    %45 = arith.addf %21, %44 : vector<8x128xf32>
    %c0_25 = arith.constant 0 : index
    %c0_26 = arith.constant 0 : index
    %46 = vector.load %arg8[%c0_25, %c0_26] : memref<1x128xf32, #tpu.memory_space<vmem>>, vector<1x128xf32>
    %47 = vector.broadcast %46 : vector<1x128xf32> to vector<8x128xf32>
    %48 = arith.addf %45, %47 : vector<8x128xf32>
    %c0_27 = arith.constant 0 : index
    %c0_28 = arith.constant 0 : index
    %49 = vector.load %arg9[%c0_27, %c0_28] : memref<8x128xf32, #tpu.memory_space<vmem>>, vector<8x128xf32>
    tpu.vector_store %arg9[%c0_27, %c0_28], %48 {strides = array<i32>} : memref<8x128xf32, #tpu.memory_space<vmem>>, vector<8x128xf32>,
    return
  }
  func.func @transform_0(%arg0: i32) -> (i32, i32) {
    %c0_i32 = arith.constant 0 : i32
    %c0_i32_0 = arith.constant 0 : i32
    return %arg0, %c0_i32 : i32, i32
  }
  func.func @transform_1(%arg0: i32) -> (i32, i32) {
    %c0_i32 = arith.constant 0 : i32
    %c0_i32_0 = arith.constant 0 : i32
    %c0_i32_1 = arith.constant 0 : i32
    return %c0_i32, %c0_i32_0 : i32, i32
  }
  func.func @transform_2(%arg0: i32) -> (i32, i32) {
    %c0_i32 = arith.constant 0 : i32
    %c0_i32_0 = arith.constant 0 : i32
    %c0_i32_1 = arith.constant 0 : i32
    return %c0_i32, %c0_i32_0 : i32, i32
  }
  func.func @transform_3(%arg0: i32) -> (i32, i32) {
    %c0_i32 = arith.constant 0 : i32
    %c0_i32_0 = arith.constant 0 : i32
    %c0_i32_1 = arith.constant 0 : i32
    return %c0_i32, %c0_i32_0 : i32, i32
  }
  func.func @transform_4(%arg0: i32) -> (i32, i32) {
    %c0_i32 = arith.constant 0 : i32
    %c0_i32_0 = arith.constant 0 : i32
    %c0_i32_1 = arith.constant 0 : i32
    return %c0_i32, %c0_i32_0 : i32, i32
  }
  func.func @transform_5(%arg0: i32) -> (i32, i32) {
    %c0_i32 = arith.constant 0 : i32
    %c0_i32_0 = arith.constant 0 : i32
    %c0_i32_1 = arith.constant 0 : i32
    return %c0_i32, %c0_i32_0 : i32, i32
  }
  func.func @transform_6(%arg0: i32) -> (i32, i32) {
    %c0_i32 = arith.constant 0 : i32
    %c0_i32_0 = arith.constant 0 : i32
    %c0_i32_1 = arith.constant 0 : i32
    return %c0_i32, %c0_i32_0 : i32, i32
  }
  func.func @transform_7(%arg0: i32) -> (i32, i32) {
    %c0_i32 = arith.constant 0 : i32
    %c0_i32_0 = arith.constant 0 : i32
    %c0_i32_1 = arith.constant 0 : i32
    return %c0_i32, %c0_i32_0 : i32, i32
  }
  func.func @transform_8(%arg0: i32) -> (i32, i32) {
    %c0_i32 = arith.constant 0 : i32
    %c0_i32_0 = arith.constant 0 : i32
    return %arg0, %c0_i32 : i32, i32
  }
}

</mosaic_0001>

<llo_original>
// kernel: tpu_custom_call.1
$region0: #{tpu_custom_call.1}
  #allocation0 [shape = 'u32[]', space=smem, size = 0x4, offset = 0x4, fixed_abs, tag = 'smem constant byte address 0x4 - core index']
  #allocation1 [shape = 'u32[144,128]{1,0:T(1,128)}', space=vmem, size = 0x12000, scoped, tag = 'internal scratch']
  %s0 = inlined_call_operand.hbm [shape: bf16[32,128], index: 0, kind: input, shape index: {}]
  %s1 = inlined_call_operand.hbm [shape: bf16[8,32], index: 1, kind: input, shape index: {}]
  %s2 = inlined_call_operand.hbm [shape: bf16[128,128], index: 2, kind: input, shape index: {}]
  %s3 = inlined_call_operand.vmem [shape: f32[1,128], index: 3, kind: input, shape index: {}]
  %s4 = inlined_call_operand.hbm [shape: bf16[128,256], index: 4, kind: input, shape index: {}]
  %s5 = inlined_call_operand.vmem [shape: f32[1,256], index: 5, kind: input, shape index: {}]
  %s6 = inlined_call_operand.hbm [shape: bf16[256,128], index: 6, kind: input, shape index: {}]
  %s7 = inlined_call_operand.vmem [shape: f32[1,128], index: 7, kind: input, shape index: {}]
  %s8 = inlined_call_operand.hbm [shape: f32[8,128], index: 8, kind: output, shape index: {}]
  %s9 = sld [smem:[#allocation0]]
  $region62: #{tpu_custom_call.1} parent=0
    _
  %s11 = ssub.s32 1, %s9
  %s12 = scalar_select 0, %s11, %s9
  $region1: #{tpu_custom_call.1} parent=0
    #allocation2 [shape = 'u8[8192]{0}', space=vmem, size = 0x2000, scoped, tag = 'input window, operand 0, single buffered']
    #allocation3 [shape = 's32[1]{0}', space=sflag, size = 0x4, scoped, tag = 'scoped memory for tpu_custom_call.1']
    #allocation4 [shape = 's32[1]{0}', space=sflag, size = 0x4, scoped, tag = 'scoped memory for tpu_custom_call.1']
    #allocation5 [shape = 'u8[2048]{0}', space=vmem, size = 0x800, scoped, tag = 'input window, operand 1, single buffered']
    #allocation6 [shape = 's32[1]{0}', space=sflag, size = 0x4, scoped, tag = 'scoped memory for tpu_custom_call.1']
    #allocation7 [shape = 'u8[32768]{0}', space=vmem, size = 0x8000, scoped, tag = 'input window, operand 2, single buffered']
    #allocation8 [shape = 'u8[65536]{0}', space=vmem, size = 0x10000, scoped, tag = 'input window, operand 4, single buffered']
    #allocation9 [shape = 's32[1]{0}', space=sflag, size = 0x4, scoped, tag = 'scoped memory for tpu_custom_call.1']
    #allocation10 [shape = 'u8[65536]{0}', space=vmem, size = 0x10000, scoped, tag = 'input window, operand 6, single buffered']
    #allocation11 [shape = 'u8[4096]{0}', space=vmem, size = 0x1000, scoped, tag = 'output window, operand 0, single buffered']
    %13 = vsyncpa [#allocation3], 0
    %14 = vsyncpa [#allocation6], 0
    %15 = vsyncpa [#allocation9], 0
    %16 = vsyncpa [#allocation4], 0
    // Predicated region
    $region2: #{tpu_custom_call.1} parent=1 // pred_check
      _
    $region3: #{tpu_custom_call.1} parent=1 // pred_check_branch
      %18 = sbr.rel (0) target = $region5
    $region4: #{tpu_custom_call.1} parent=1 // pred_region
      %s20 = ssub.s32 256, 256
      %21 = vsyncadd [#allocation3], %s20
      %s22 = sshll.u32 [#allocation2], 4
      %s23 = int_to_ptr.vmem [resolvable:$true] %s22
      %28 = dma.hbm_to_vmem [thread:$0]  %s0, 256, %s23, [#allocation3], 64, 64, 4
    $region5: #{tpu_custom_call.1} parent=1 // pred_fallthru
      _
    // Predicated region
    $region6: #{tpu_custom_call.1} parent=1 // pred_check
      _
    $region7: #{tpu_custom_call.1} parent=1 // pred_check_branch
      %30 = sbr.rel (0) target = $region9
    $region8: #{tpu_custom_call.1} parent=1 // pred_region
      %s32 = ssub.s32 64, 64
      %33 = vsyncadd [#allocation6], %s32
      %s35 = sshll.u32 [#allocation5], 4
      %s36 = int_to_ptr.vmem [resolvable:$true] %s35
      %38 = dma.hbm_to_vmem [thread:$0]  %s1, 64, %s36, [#allocation6]
    $region9: #{tpu_custom_call.1} parent=1 // pred_fallthru
      _
    // Predicated region
    $region10: #{tpu_custom_call.1} parent=1 // pred_check
      _
    $region11: #{tpu_custom_call.1} parent=1 // pred_check_branch
      %40 = sbr.rel (0) target = $region13
    $region12: #{tpu_custom_call.1} parent=1 // pred_region
      %s42 = ssub.s32 1024, 1024
      %43 = vsyncadd [#allocation6], %s42
      %s44 = sshll.u32 [#allocation7], 4
      %s45 = int_to_ptr.vmem [resolvable:$true] %s44
      %50 = dma.hbm_to_vmem [thread:$0]  %s2, 1024, %s45, [#allocation6], 64, 64, 4
    $region13: #{tpu_custom_call.1} parent=1 // pred_fallthru
      _
    // Predicated region
    $region14: #{tpu_custom_call.1} parent=1 // pred_check
      _
    $region15: #{tpu_custom_call.1} parent=1 // pred_check_branch
      %52 = sbr.rel (0) target = $region17
    $region16: #{tpu_custom_call.1} parent=1 // pred_region
      _
    $region17: #{tpu_custom_call.1} parent=1 // pred_fallthru
      _
    // Predicated region
    $region18: #{tpu_custom_call.1} parent=1 // pred_check
      _
    $region19: #{tpu_custom_call.1} parent=1 // pred_check_branch
      %54 = sbr.rel (0) target = $region21
    $region20: #{tpu_custom_call.1} parent=1 // pred_region
      %s56 = ssub.s32 2048, 2048
      %57 = vsyncadd [#allocation9], %s56
      %s58 = sshll.u32 [#allocation8], 4
      %s59 = int_to_ptr.vmem [resolvable:$true] %s58
      %64 = dma.hbm_to_vmem [thread:$0]  %s4, 2048, %s59, [#allocation9], 128, 128, 8
    $region21: #{tpu_custom_call.1} parent=1 // pred_fallthru
      _
    // Predicated region
    $region22: #{tpu_custom_call.1} parent=1 // pred_check
      _
    $region23: #{tpu_custom_call.1} parent=1 // pred_check_branch
      %66 = sbr.rel (0) target = $region25
    $region24: #{tpu_custom_call.1} parent=1 // pred_region
      _
    $region25: #{tpu_custom_call.1} parent=1 // pred_fallthru
      _
    // Predicated region
    $region26: #{tpu_custom_call.1} parent=1 // pred_check
      _
    $region27: #{tpu_custom_call.1} parent=1 // pred_check_branch
      %68 = sbr.rel (0) target = $region29
    $region28: #{tpu_custom_call.1} parent=1 // pred_region
      %s70 = ssub.s32 2048, 2048
      %71 = vsyncadd [#allocation9], %s70
      %s72 = sshll.u32 [#allocation10], 4
      %s73 = int_to_ptr.vmem [resolvable:$true] %s72
      %78 = dma.hbm_to_vmem [thread:$0]  %s6, 2048, %s73, [#allocation9], 64, 64, 4
    $region29: #{tpu_custom_call.1} parent=1 // pred_fallthru
      _
    // Predicated region
    $region30: #{tpu_custom_call.1} parent=1 // pred_check
      _
    $region31: #{tpu_custom_call.1} parent=1 // pred_check_branch
      %80 = sbr.rel (0) target = $region33
    $region32: #{tpu_custom_call.1} parent=1 // pred_region
      _
    $region33: #{tpu_custom_call.1} parent=1 // pred_fallthru
      _
    // Predicated region
    $region34: #{tpu_custom_call.1} parent=1 // pred_check
      _
    $region35: #{tpu_custom_call.1} parent=1 // pred_check_branch
      %82 = sbr.rel (0) target = $region37
    $region36: #{tpu_custom_call.1} parent=1 // pred_region
      %83 = dma.done [#allocation3], 256
    $region37: #{tpu_custom_call.1} parent=1 // pred_fallthru
      _
    // Predicated region
    $region38: #{tpu_custom_call.1} parent=1 // pred_check
      _
    $region39: #{tpu_custom_call.1} parent=1 // pred_check_branch
      %85 = sbr.rel (0) target = $region41
    $region40: #{tpu_custom_call.1} parent=1 // pred_region
      %86 = dma.done [#allocation6], 64
    $region41: #{tpu_custom_call.1} parent=1 // pred_fallthru
      _
    // Predicated region
    $region42: #{tpu_custom_call.1} parent=1 // pred_check
      _
    $region43: #{tpu_custom_call.1} parent=1 // pred_check_branch
      %88 = sbr.rel (0) target = $region45
    $region44: #{tpu_custom_call.1} parent=1 // pred_region
      %89 = dma.done [#allocation6], 1024
    $region45: #{tpu_custom_call.1} parent=1 // pred_fallthru
      _
    // Predicated region
    $region46: #{tpu_custom_call.1} parent=1 // pred_check
      _
    $region47: #{tpu_custom_call.1} parent=1 // pred_check_branch
      %91 = sbr.rel (0) target = $region49
    $region48: #{tpu_custom_call.1} parent=1 // pred_region
      %92 = dma.done [#allocation9], 2048
    $region49: #{tpu_custom_call.1} parent=1 // pred_fallthru
      _
    // Predicated region
    $region50: #{tpu_custom_call.1} parent=1 // pred_check
      _
    $region51: #{tpu_custom_call.1} parent=1 // pred_check_branch
      %94 = sbr.rel (0) target = $region53
    $region52: #{tpu_custom_call.1} parent=1 // pred_region
      %95 = dma.done [#allocation9], 2048
    $region53: #{tpu_custom_call.1} parent=1 // pred_fallthru
      _
    %v97 = vld [vmem:[#allocation2] sm:$0xf]
    %v98 = vld [vmem:[#allocation2 + $0x4] sm:$0xf]
    %v99 = vld [vmem:[#allocation2 + $0x8] sm:$0xf]
    %v100 = vld [vmem:[#allocation2 + $0xc] sm:$0xf]
    %v101 = vld [vmem:[#allocation5] sm:$0xf]
    %v102 = vld [vmem:[#allocation7] sm:$0xf]
    %v103 = vld [vmem:[#allocation7 + $0x4] sm:$0xf]
    %v104 = vld [vmem:[#allocation7 + $0x8] sm:$0xf]
    %v105 = vld [vmem:[#allocation7 + $0xc] sm:$0xf]
    %v106 = vld [vmem:[#allocation7 + $0x10] sm:$0xf]
    %v107 = vld [vmem:[#allocation7 + $0x14] sm:$0xf]
    %v108 = vld [vmem:[#allocation7 + $0x18] sm:$0xf]
    %v109 = vld [vmem:[#allocation7 + $0x1c] sm:$0xf]
    %v110 = vld [vmem:[#allocation7 + $0x20] sm:$0xf]
    %v111 = vld [vmem:[#allocation7 + $0x24] sm:$0xf]
    %v112 = vld [vmem:[#allocation7 + $0x28] sm:$0xf]
    %v113 = vld [vmem:[#allocation7 + $0x2c] sm:$0xf]
    %v114 = vld [vmem:[#allocation7 + $0x30] sm:$0xf]
    %v115 = vld [vmem:[#allocation7 + $0x34] sm:$0xf]
    %v116 = vld [vmem:[#allocation7 + $0x38] sm:$0xf]
    %v117 = vld [vmem:[#allocation7 + $0x3c] sm:$0xf]
    %v118 = vld [vmem:[%s3] sm:$0x1]
    %v120 = vlaneseq
    %v121 = vshrl.u32 %v120, 7
    %v122 = vsub.s32 0, %v121
    %v123 = vrot.slane %v118, %v122
    %v129 = vunpack.c.l.b16 %v97
    %v130 = vunpack.c.l.b16 %v98
    %v131 = vunpack.c.l.b16 %v99
    %v132 = vunpack.c.l.b16 %v100
    %v133 = vpack.c.b16 %v130, %v129
    %v134 = vpack.c.b16 %v132, %v131
    %v153 = vunpack.c.l.b16 %v102
    %v154 = vunpack.c.l.b16 %v103
    %v155 = vunpack.c.l.b16 %v104
    %v156 = vunpack.c.l.b16 %v105
    %v157 = vunpack.c.l.b16 %v106
    %v158 = vunpack.c.l.b16 %v107
    %v159 = vunpack.c.l.b16 %v108
    %v160 = vunpack.c.l.b16 %v109
    %v161 = vunpack.c.l.b16 %v110
    %v162 = vunpack.c.l.b16 %v111
    %v163 = vunpack.c.l.b16 %v112
    %v164 = vunpack.c.l.b16 %v113
    %v165 = vunpack.c.l.b16 %v114
    %v166 = vunpack.c.l.b16 %v115
    %v167 = vunpack.c.l.b16 %v116
    %v168 = vunpack.c.l.b16 %v117
    %v169 = vpack.c.b16 %v154, %v153
    %v170 = vpack.c.b16 %v156, %v155
    %v171 = vpack.c.b16 %v158, %v157
    %v172 = vpack.c.b16 %v160, %v159
    %v173 = vpack.c.b16 %v162, %v161
    %v174 = vpack.c.b16 %v164, %v163
    %v175 = vpack.c.b16 %v166, %v165
    %v176 = vpack.c.b16 %v168, %v167
    %185 = vmatprep.subr.bf16.mxu0 0
    %186 = vmatpush1.bf16.msra.mxu0 %v169
    %187 = vmatprep.subr.bf16.mxu0 0
    %188 = vmatpush1.bf16.msra.mxu0 %v170
    %189 = vmatprep.subr.bf16.mxu0 0
    %190 = vmatpush1.bf16.msra.mxu0 %v171
    %191 = vmatprep.subr.bf16.mxu0 0
    %192 = vmatpush1.bf16.msra.mxu0 %v172
    %193 = vmatprep.subr.bf16.mxu0 0
    %194 = vmatpush1.bf16.msra.mxu0 %v173
    %195 = vmatprep.subr.bf16.mxu0 0
    %196 = vmatpush1.bf16.msra.mxu0 %v174
    %197 = vmatprep.subr.bf16.mxu0 0
    %198 = vmatpush1.bf16.msra.mxu0 %v175
    %199 = vmatprep.subr.bf16.mxu0 0
    %200 = vmatpush1.bf16.msra.mxu0 %v176
    %201 = vmatprep.subr.bf16.mxu0 0
    %202 = vmatpush1.bf16.msra.mxu0 0
    %203 = vmatprep.subr.bf16.mxu0 0
    %204 = vmatpush1.bf16.msra.mxu0 0
    %205 = vmatprep.subr.bf16.mxu0 0
    %206 = vmatpush1.bf16.msra.mxu0 0
    %207 = vmatprep.subr.bf16.mxu0 0
    %208 = vmatpush1.bf16.msra.mxu0 0
    %209 = vmatprep.subr.bf16.mxu0 0
    %210 = vmatpush1.bf16.msra.mxu0 0
    %211 = vmatprep.subr.bf16.mxu0 0
    %212 = vmatpush1.bf16.msra.mxu0 0
    %213 = vmatprep.subr.bf16.mxu0 0
    %214 = vmatpush1.bf16.msra.mxu0 0
    %215 = vmatprep.subr.bf16.mxu0 0
    %216 = vmatpush1.bf16.msra.mxu0 0
    %217 = vmatprep.mubr.bf16.mxu0 0
    %218 = vmatmul.mubr.bf16.gmra.mrb[0].mxu0 %v133
    %v219 = vpop.f32.mrb[0].mxu0
    %v220 = vadd.f32 %v123, %v219
    %v221 = vpop.f32.mrb[0].mxu0
    %v222 = vpop.f32.mrb[0].mxu0
    %v223 = vadd.f32 %v123, %v222
    %v224 = vpop.f32.mrb[0].mxu0
    %225 = vmatprep.mubr.bf16.mxu0 0
    %226 = vmatmul.mubr.bf16.gmra.mrb[0].mxu0 %v134
    %v227 = vpop.f32.mrb[0].mxu0
    %v228 = vadd.f32 %v123, %v227
    %v229 = vpop.f32.mrb[0].mxu0
    %v230 = vpop.f32.mrb[0].mxu0
    %v231 = vadd.f32 %v123, %v230
    %v232 = vpop.f32.mrb[0].mxu0
    %233 = vdwg.mxu0
    %v234 = vmul.f32 %v220, %v220
    %v235 = vmul.f32 %v223, %v223
    %v236 = vmul.f32 %v228, %v228
    %v237 = vmul.f32 %v231, %v231
    %v238 = vmul.f32 %v220, %v234
    %v239 = vmul.f32 %v223, %v235
    %v240 = vmul.f32 %v228, %v236
    %v241 = vmul.f32 %v231, %v237
    %v242 = vmul.f32 %v238, 0.044715
    %v243 = vmul.f32 %v239, 0.044715
    %v244 = vmul.f32 %v240, 0.044715
    %v245 = vmul.f32 %v241, 0.044715
    %v246 = vadd.f32 %v220, %v242
    %v247 = vadd.f32 %v223, %v243
    %v248 = vadd.f32 %v228, %v244
    %v249 = vadd.f32 %v231, %v245
    %v250 = vmul.f32 %v246, 0.7978846
    %v251 = vmul.f32 %v247, 0.7978846
    %v252 = vmul.f32 %v248, 0.7978846
    %v253 = vmul.f32 %v249, 0.7978846
    %v254 = vtanh.pop %v250
    %v255 = vtanh.pop %v251
    %v256 = vtanh.pop %v252
    %v257 = vtanh.pop %v253
    %v258 = vadd.f32 %v254, 1.0
    %v259 = vadd.f32 %v255, 1.0
    %v260 = vadd.f32 %v256, 1.0
    %v261 = vadd.f32 %v257, 1.0
    %v262 = vmul.f32 %v258, 0.5
    %v263 = vmul.f32 %v259, 0.5
    %v264 = vmul.f32 %v260, 0.5
    %v265 = vmul.f32 %v261, 0.5
    %v266 = vmul.f32 %v220, %v262
    %v267 = vmul.f32 %v223, %v263
    %v268 = vmul.f32 %v228, %v264
    %v269 = vmul.f32 %v231, %v265
    %v270 = vpack.c.bf16 %v267, %v266
    %v271 = vpack.c.bf16 %v269, %v268
    %v272 = vld [vmem:[#allocation8] sm:$0xff]
    %v273 = vld [vmem:[#allocation8 + $0x8] sm:$0xff]
    %v274 = vld [vmem:[#allocation8 + $0x10] sm:$0xff]
    %v275 = vld [vmem:[#allocation8 + $0x18] sm:$0xff]
    %v276 = vld [vmem:[#allocation8 + $0x20] sm:$0xff]
    %v277 = vld [vmem:[#allocation8 + $0x28] sm:$0xff]
    %v278 = vld [vmem:[#allocation8 + $0x30] sm:$0xff]
    %v279 = vld [vmem:[#allocation8 + $0x38] sm:$0xff]
    %v280 = vld [vmem:[#allocation8 + $0x40] sm:$0xff]
    %v281 = vld [vmem:[#allocation8 + $0x48] sm:$0xff]
    %v282 = vld [vmem:[#allocation8 + $0x50] sm:$0xff]
    %v283 = vld [vmem:[#allocation8 + $0x58] sm:$0xff]
    %v284 = vld [vmem:[#allocation8 + $0x60] sm:$0xff]
    %v285 = vld [vmem:[#allocation8 + $0x68] sm:$0xff]
    %v286 = vld [vmem:[#allocation8 + $0x70] sm:$0xff]
    %v287 = vld [vmem:[#allocation8 + $0x78] sm:$0xff]
    %v288 = vld [vmem:[%s5] sm:$0x3]
    %v290 = vlaneseq
    %v291 = vshrl.u32 %v290, 7
    %v292 = vsub.s32 0, %v291
    %v293 = vrot.slane %v288, %v292
    %v294 = vlaneseq
    %v295 = vshrl.u32 %v294, 7
    %v296 = vsub.s32 1, %v295
    %v297 = vrot.slane %v288, %v296
    %v316 = vunpack.c.l.b16 %v272
    %v317 = vunpack.c.h.b16 %v272
    %v318 = vunpack.c.l.b16 %v273
    %v319 = vunpack.c.h.b16 %v273
    %v320 = vunpack.c.l.b16 %v274
    %v321 = vunpack.c.h.b16 %v274
    %v322 = vunpack.c.l.b16 %v275
    %v323 = vunpack.c.h.b16 %v275
    %v324 = vunpack.c.l.b16 %v276
    %v325 = vunpack.c.h.b16 %v276
    %v326 = vunpack.c.l.b16 %v277
    %v327 = vunpack.c.h.b16 %v277
    %v328 = vunpack.c.l.b16 %v278
    %v329 = vunpack.c.h.b16 %v278
    %v330 = vunpack.c.l.b16 %v279
    %v331 = vunpack.c.h.b16 %v279
    %v332 = vunpack.c.l.b16 %v280
    %v333 = vunpack.c.h.b16 %v280
    %v334 = vunpack.c.l.b16 %v281
    %v335 = vunpack.c.h.b16 %v281
    %v336 = vunpack.c.l.b16 %v282
    %v337 = vunpack.c.h.b16 %v282
    %v338 = vunpack.c.l.b16 %v283
    %v339 = vunpack.c.h.b16 %v283
    %v340 = vunpack.c.l.b16 %v284
    %v341 = vunpack.c.h.b16 %v284
    %v342 = vunpack.c.l.b16 %v285
    %v343 = vunpack.c.h.b16 %v285
    %v344 = vunpack.c.l.b16 %v286
    %v345 = vunpack.c.h.b16 %v286
    %v346 = vunpack.c.l.b16 %v287
    %v347 = vunpack.c.h.b16 %v287
    %v348 = vpack.c.b16 %v318, %v316
    %v349 = vpack.c.b16 %v319, %v317
    %v350 = vpack.c.b16 %v322, %v320
    %v351 = vpack.c.b16 %v323, %v321
    %v352 = vpack.c.b16 %v326, %v324
    %v353 = vpack.c.b16 %v327, %v325
    %v354 = vpack.c.b16 %v330, %v328
    %v355 = vpack.c.b16 %v331, %v329
    %v356 = vpack.c.b16 %v334, %v332
    %v357 = vpack.c.b16 %v335, %v333
    %v358 = vpack.c.b16 %v338, %v336
    %v359 = vpack.c.b16 %v339, %v337
    %v360 = vpack.c.b16 %v342, %v340
    %v361 = vpack.c.b16 %v343, %v341
    %v362 = vpack.c.b16 %v346, %v344
    %v363 = vpack.c.b16 %v347, %v345
    %380 = vmatprep.subr.bf16.mxu0 %v349
    %381 = vmatpush1.bf16.msra.mxu0 %v348
    %382 = vmatprep.subr.bf16.mxu0 %v351
    %383 = vmatpush1.bf16.msra.mxu0 %v350
    %384 = vmatprep.subr.bf16.mxu0 %v353
    %385 = vmatpush1.bf16.msra.mxu0 %v352
    %386 = vmatprep.subr.bf16.mxu0 %v355
    %387 = vmatpush1.bf16.msra.mxu0 %v354
    %388 = vmatprep.subr.bf16.mxu0 %v357
    %389 = vmatpush1.bf16.msra.mxu0 %v356
    %390 = vmatprep.subr.bf16.mxu0 %v359
    %391 = vmatpush1.bf16.msra.mxu0 %v358
    %392 = vmatprep.subr.bf16.mxu0 %v361
    %393 = vmatpush1.bf16.msra.mxu0 %v360
    %394 = vmatprep.subr.bf16.mxu0 %v363
    %395 = vmatpush1.bf16.msra.mxu0 %v362
    %396 = vmatprep.subr.bf16.mxu0 0
    %397 = vmatpush1.bf16.msra.mxu0 0
    %398 = vmatprep.subr.bf16.mxu0 0
    %399 = vmatpush1.bf16.msra.mxu0 0
    %400 = vmatprep.subr.bf16.mxu0 0
    %401 = vmatpush1.bf16.msra.mxu0 0
    %402 = vmatprep.subr.bf16.mxu0 0
    %403 = vmatpush1.bf16.msra.mxu0 0
    %404 = vmatprep.subr.bf16.mxu0 0
    %405 = vmatpush1.bf16.msra.mxu0 0
    %406 = vmatprep.subr.bf16.mxu0 0
    %407 = vmatpush1.bf16.msra.mxu0 0
    %408 = vmatprep.subr.bf16.mxu0 0
    %409 = vmatpush1.bf16.msra.mxu0 0
    %410 = vmatprep.subr.bf16.mxu0 0
    %411 = vmatpush1.bf16.msra.mxu0 0
    %412 = vmatprep.mubr.bf16.mxu0 0
    %413 = vmatmul.mubr.bf16.gmra.mrb[0].mxu0 %v270
    %v414 = vpop.f32.mrb[0].mxu0
    %v415 = vadd.f32 %v293, %v414
    %v416 = vpop.f32.mrb[0].mxu0
    %v417 = vadd.f32 %v297, %v416
    %v418 = vpop.f32.mrb[0].mxu0
    %v419 = vadd.f32 %v293, %v418
    %v420 = vpop.f32.mrb[0].mxu0
    %v421 = vadd.f32 %v297, %v420
    %422 = vmatprep.mubr.bf16.mxu0 0
    %423 = vmatmul.mubr.bf16.gmra.mrb[0].mxu0 %v271
    %v424 = vpop.f32.mrb[0].mxu0
    %v425 = vadd.f32 %v293, %v424
    %v426 = vpop.f32.mrb[0].mxu0
    %v427 = vadd.f32 %v297, %v426
    %v428 = vpop.f32.mrb[0].mxu0
    %v429 = vadd.f32 %v293, %v428
    %v430 = vpop.f32.mrb[0].mxu0
    %v431 = vadd.f32 %v297, %v430
    %432 = vdwg.mxu0
    %v433 = vmul.f32 %v415, %v415
    %v434 = vmul.f32 %v417, %v417
    %v435 = vmul.f32 %v419, %v419
    %v436 = vmul.f32 %v421, %v421
    %v437 = vmul.f32 %v425, %v425
    %v438 = vmul.f32 %v427, %v427
    %v439 = vmul.f32 %v429, %v429
    %v440 = vmul.f32 %v431, %v431
    %v441 = vmul.f32 %v415, %v433
    %v442 = vmul.f32 %v417, %v434
    %v443 = vmul.f32 %v419, %v435
    %v444 = vmul.f32 %v421, %v436
    %v445 = vmul.f32 %v425, %v437
    %v446 = vmul.f32 %v427, %v438
    %v447 = vmul.f32 %v429, %v439
    %v448 = vmul.f32 %v431, %v440
    %v449 = vmul.f32 %v441, 0.044715
    %v450 = vmul.f32 %v442, 0.044715
    %v451 = vmul.f32 %v443, 0.044715
    %v452 = vmul.f32 %v444, 0.044715
    %v453 = vmul.f32 %v445, 0.044715
    %v454 = vmul.f32 %v446, 0.044715
    %v455 = vmul.f32 %v447, 0.044715
    %v456 = vmul.f32 %v448, 0.044715
    %v457 = vadd.f32 %v415, %v449
    %v458 = vadd.f32 %v417, %v450
    %v459 = vadd.f32 %v419, %v451
    %v460 = vadd.f32 %v421, %v452
    %v461 = vadd.f32 %v425, %v453
    %v462 = vadd.f32 %v427, %v454
    %v463 = vadd.f32 %v429, %v455
    %v464 = vadd.f32 %v431, %v456
    %v465 = vmul.f32 %v457, 0.7978846
    %v466 = vmul.f32 %v458, 0.7978846
    %v467 = vmul.f32 %v459, 0.7978846
    %v468 = vmul.f32 %v460, 0.7978846
    %v469 = vmul.f32 %v461, 0.7978846
    %v470 = vmul.f32 %v462, 0.7978846
    %v471 = vmul.f32 %v463, 0.7978846
    %v472 = vmul.f32 %v464, 0.7978846
    %v473 = vtanh.pop %v465
    %v474 = vtanh.pop %v466
    %v475 = vtanh.pop %v467
    %v476 = vtanh.pop %v468
    %v477 = vtanh.pop %v469
    %v478 = vtanh.pop %v470
    %v479 = vtanh.pop %v471
    %v480 = vtanh.pop %v472
    %v481 = vadd.f32 %v473, 1.0
    %v482 = vadd.f32 %v474, 1.0
    %v483 = vadd.f32 %v475, 1.0
    %v484 = vadd.f32 %v476, 1.0
    %v485 = vadd.f32 %v477, 1.0
    %v486 = vadd.f32 %v478, 1.0
    %v487 = vadd.f32 %v479, 1.0
    %v488 = vadd.f32 %v480, 1.0
    %v489 = vmul.f32 %v481, 0.5
    %v490 = vmul.f32 %v482, 0.5
    %v491 = vmul.f32 %v483, 0.5
    %v492 = vmul.f32 %v484, 0.5
    %v493 = vmul.f32 %v485, 0.5
    %v494 = vmul.f32 %v486, 0.5
    %v495 = vmul.f32 %v487, 0.5
    %v496 = vmul.f32 %v488, 0.5
    %v497 = vmul.f32 %v415, %v489
    %v498 = vmul.f32 %v417, %v490
    %v499 = vmul.f32 %v419, %v491
    %v500 = vmul.f32 %v421, %v492
    %v501 = vmul.f32 %v425, %v493
    %v502 = vmul.f32 %v427, %v494
    %v503 = vmul.f32 %v429, %v495
    %v504 = vmul.f32 %v431, %v496
    %v505 = vpack.c.bf16 %v499, %v497
    %v506 = vpack.c.bf16 %v500, %v498
    %v507 = vpack.c.bf16 %v503, %v501
    %v508 = vpack.c.bf16 %v504, %v502
    %vm509 = vcmask 261120
    %v511 = vsel %vm509, %v101, 0
    %513 = vmatprep.subr.bf16.mxu0 %v506
    %514 = vmatpush1.bf16.msra.mxu0 %v505
    %515 = vmatprep.subr.bf16.mxu0 %v508
    %516 = vmatpush1.bf16.msra.mxu0 %v507
    %517 = vmatprep.subr.bf16.mxu0 0
    %518 = vmatpush1.bf16.msra.mxu0 0
    %519 = vmatprep.subr.bf16.mxu0 0
    %520 = vmatpush1.bf16.msra.mxu0 0
    %521 = vmatprep.subr.bf16.mxu0 0
    %522 = vmatpush1.bf16.msra.mxu0 0
    %523 = vmatprep.subr.bf16.mxu0 0
    %524 = vmatpush1.bf16.msra.mxu0 0
    %525 = vmatprep.subr.bf16.mxu0 0
    %526 = vmatpush1.bf16.msra.mxu0 0
    %527 = vmatprep.subr.bf16.mxu0 0
    %528 = vmatpush1.bf16.msra.mxu0 0
    %529 = vmatprep.subr.bf16.mxu0 0
    %530 = vmatpush1.bf16.msra.mxu0 0
    %531 = vmatprep.subr.bf16.mxu0 0
    %532 = vmatpush1.bf16.msra.mxu0 0
    %533 = vmatprep.subr.bf16.mxu0 0
    %534 = vmatpush1.bf16.msra.mxu0 0
    %535 = vmatprep.subr.bf16.mxu0 0
    %536 = vmatpush1.bf16.msra.mxu0 0
    %537 = vmatprep.subr.bf16.mxu0 0
    %538 = vmatpush1.bf16.msra.mxu0 0
    %539 = vmatprep.subr.bf16.mxu0 0
    %540 = vmatpush1.bf16.msra.mxu0 0
    %541 = vmatprep.subr.bf16.mxu0 0
    %542 = vmatpush1.bf16.msra.mxu0 0
    %543 = vmatprep.subr.bf16.mxu0 0
    %544 = vmatpush1.bf16.msra.mxu0 0
    %545 = vmatprep.mubr.bf16.mxu0 0
    %546 = vmatmul.mubr.bf16.gmra.mrb[0].mxu0 %v511
    %v547 = vpop.f32.mrb[0].mxu0
    %v548 = vadd.f32 0.0, %v547
    %v549 = vpop.f32.mrb[0].mxu0
    %v550 = vadd.f32 0.0, %v549
    %v551 = vpop.f32.mrb[0].mxu0
    %v552 = vpop.f32.mrb[0].mxu0
    %553 = vdwg.mxu0
    %v554 = vpack.c.bf16 %v548, %v548
    %v555 = vpack.c.bf16 %v550, %v550
    %v556 = vld [vmem:[#allocation10] sm:$0xf]
    %v557 = vld [vmem:[#allocation10 + $0x4] sm:$0xf]
    %v558 = vld [vmem:[#allocation10 + $0x8] sm:$0xf]
    %v559 = vld [vmem:[#allocation10 + $0xc] sm:$0xf]
    %v560 = vld [vmem:[#allocation10 + $0x10] sm:$0xf]
    %v561 = vld [vmem:[#allocation10 + $0x14] sm:$0xf]
    %v562 = vld [vmem:[#allocation10 + $0x18] sm:$0xf]
    %v563 = vld [vmem:[#allocation10 + $0x1c] sm:$0xf]
    %v564 = vld [vmem:[#allocation10 + $0x20] sm:$0xf]
    %v565 = vld [vmem:[#allocation10 + $0x24] sm:$0xf]
    %v566 = vld [vmem:[#allocation10 + $0x28] sm:$0xf]
    %v567 = vld [vmem:[#allocation10 + $0x2c] sm:$0xf]
    %v568 = vld [vmem:[#allocation10 + $0x30] sm:$0xf]
    %v569 = vld [vmem:[#allocation10 + $0x34] sm:$0xf]
    %v570 = vld [vmem:[#allocation10 + $0x38] sm:$0xf]
    %v571 = vld [vmem:[#allocation10 + $0x3c] sm:$0xf]
    %v572 = vld [vmem:[#allocation10 + $0x40] sm:$0xf]
    %v573 = vld [vmem:[#allocation10 + $0x44] sm:$0xf]
    %v574 = vld [vmem:[#allocation10 + $0x48] sm:$0xf]
    %v575 = vld [vmem:[#allocation10 + $0x4c] sm:$0xf]
    %v576 = vld [vmem:[#allocation10 + $0x50] sm:$0xf]
    %v577 = vld [vmem:[#allocation10 + $0x54] sm:$0xf]
    %v578 = vld [vmem:[#allocation10 + $0x58] sm:$0xf]
    %v579 = vld [vmem:[#allocation10 + $0x5c] sm:$0xf]
    %v580 = vld [vmem:[#allocation10 + $0x60] sm:$0xf]
    %v581 = vld [vmem:[#allocation10 + $0x64] sm:$0xf]
    %v582 = vld [vmem:[#allocation10 + $0x68] sm:$0xf]
    %v583 = vld [vmem:[#allocation10 + $0x6c] sm:$0xf]
    %v584 = vld [vmem:[#allocation10 + $0x70] sm:$0xf]
    %v585 = vld [vmem:[#allocation10 + $0x74] sm:$0xf]
    %v586 = vld [vmem:[#allocation10 + $0x78] sm:$0xf]
    %v587 = vld [vmem:[#allocation10 + $0x7c] sm:$0xf]
    %v620 = vunpack.c.l.b16 %v556
    %v621 = vunpack.c.l.b16 %v557
    %v622 = vunpack.c.l.b16 %v558
    %v623 = vunpack.c.l.b16 %v559
    %v624 = vunpack.c.l.b16 %v560
    %v625 = vunpack.c.l.b16 %v561
    %v626 = vunpack.c.l.b16 %v562
    %v627 = vunpack.c.l.b16 %v563
    %v628 = vunpack.c.l.b16 %v564
    %v629 = vunpack.c.l.b16 %v565
    %v630 = vunpack.c.l.b16 %v566
    %v631 = vunpack.c.l.b16 %v567
    %v632 = vunpack.c.l.b16 %v568
    %v633 = vunpack.c.l.b16 %v569
    %v634 = vunpack.c.l.b16 %v570
    %v635 = vunpack.c.l.b16 %v571
    %v636 = vunpack.c.l.b16 %v572
    %v637 = vunpack.c.l.b16 %v573
    %v638 = vunpack.c.l.b16 %v574
    %v639 = vunpack.c.l.b16 %v575
    %v640 = vunpack.c.l.b16 %v576
    %v641 = vunpack.c.l.b16 %v577
    %v642 = vunpack.c.l.b16 %v578
    %v643 = vunpack.c.l.b16 %v579
    %v644 = vunpack.c.l.b16 %v580
    %v645 = vunpack.c.l.b16 %v581
    %v646 = vunpack.c.l.b16 %v582
    %v647 = vunpack.c.l.b16 %v583
    %v648 = vunpack.c.l.b16 %v584
    %v649 = vunpack.c.l.b16 %v585
    %v650 = vunpack.c.l.b16 %v586
    %v651 = vunpack.c.l.b16 %v587
    %v652 = vpack.c.b16 %v621, %v620
    %v653 = vpack.c.b16 %v623, %v622
    %v654 = vpack.c.b16 %v625, %v624
    %v655 = vpack.c.b16 %v627, %v626
    %v656 = vpack.c.b16 %v629, %v628
    %v657 = vpack.c.b16 %v631, %v630
    %v658 = vpack.c.b16 %v633, %v632
    %v659 = vpack.c.b16 %v635, %v634
    %v660 = vpack.c.b16 %v637, %v636
    %v661 = vpack.c.b16 %v639, %v638
    %v662 = vpack.c.b16 %v641, %v640
    %v663 = vpack.c.b16 %v643, %v642
    %v664 = vpack.c.b16 %v645, %v644
    %v665 = vpack.c.b16 %v647, %v646
    %v666 = vpack.c.b16 %v649, %v648
    %v667 = vpack.c.b16 %v651, %v650
    %684 = vmatprep.subr.bf16.mxu0 0
    %685 = vmatpush1.bf16.msra.mxu0 %v652
    %686 = vmatprep.subr.bf16.mxu0 0
    %687 = vmatpush1.bf16.msra.mxu0 %v653
    %688 = vmatprep.subr.bf16.mxu0 0
    %689 = vmatpush1.bf16.msra.mxu0 %v654
    %690 = vmatprep.subr.bf16.mxu0 0
    %691 = vmatpush1.bf16.msra.mxu0 %v655
    %692 = vmatprep.subr.bf16.mxu0 0
    %693 = vmatpush1.bf16.msra.mxu0 %v656
    %694 = vmatprep.subr.bf16.mxu0 0
    %695 = vmatpush1.bf16.msra.mxu0 %v657
    %696 = vmatprep.subr.bf16.mxu0 0
    %697 = vmatpush1.bf16.msra.mxu0 %v658
    %698 = vmatprep.subr.bf16.mxu0 0
    %699 = vmatpush1.bf16.msra.mxu0 %v659
    %700 = vmatprep.subr.bf16.mxu0 0
    %701 = vmatpush1.bf16.msra.mxu0 %v660
    %702 = vmatprep.subr.bf16.mxu0 0
    %703 = vmatpush1.bf16.msra.mxu0 %v661
    %704 = vmatprep.subr.bf16.mxu0 0
    %705 = vmatpush1.bf16.msra.mxu0 %v662
    %706 = vmatprep.subr.bf16.mxu0 0
    %707 = vmatpush1.bf16.msra.mxu0 %v663
    %708 = vmatprep.subr.bf16.mxu0 0
    %709 = vmatpush1.bf16.msra.mxu0 %v664
    %710 = vmatprep.subr.bf16.mxu0 0
    %711 = vmatpush1.bf16.msra.mxu0 %v665
    %712 = vmatprep.subr.bf16.mxu0 0
    %713 = vmatpush1.bf16.msra.mxu0 %v666
    %714 = vmatprep.subr.bf16.mxu0 0
    %715 = vmatpush1.bf16.msra.mxu0 %v667
    %716 = vmatprep.mubr.bf16.mxu0 %v555
    %717 = vmatmul.mubr.bf16.gmra.mrb[0].mxu0 %v554
    %v718 = vpop.f32.mrb[0].mxu0
    %v719 = vadd.f32 0.0, %v718
    %v720 = vpop.f32.mrb[0].mxu0
    %v721 = vpop.f32.mrb[0].mxu0
    %v722 = vpop.f32.mrb[0].mxu0
    %723 = vdwg.mxu0
    %724 = vmatprep.subr.bf16.mxu0 0
    %725 = vmatpush1.bf16.msra.mxu0 %v270
    %726 = vmatprep.subr.bf16.mxu0 0
    %727 = vmatpush1.bf16.msra.mxu0 %v271
    %728 = vmatprep.subr.bf16.mxu0 0
    %729 = vmatpush1.bf16.msra.mxu0 0
    %730 = vmatprep.subr.bf16.mxu0 0
    %731 = vmatpush1.bf16.msra.mxu0 0
    %732 = vmatprep.subr.bf16.mxu0 0
    %733 = vmatpush1.bf16.msra.mxu0 0
    %734 = vmatprep.subr.bf16.mxu0 0
    %735 = vmatpush1.bf16.msra.mxu0 0
    %736 = vmatprep.subr.bf16.mxu0 0
    %737 = vmatpush1.bf16.msra.mxu0 0
    %738 = vmatprep.subr.bf16.mxu0 0
    %739 = vmatpush1.bf16.msra.mxu0 0
    %740 = vmatprep.subr.bf16.mxu0 0
    %741 = vmatpush1.bf16.msra.mxu0 0
    %742 = vmatprep.subr.bf16.mxu0 0
    %743 = vmatpush1.bf16.msra.mxu0 0
    %744 = vmatprep.subr.bf16.mxu0 0
    %745 = vmatpush1.bf16.msra.mxu0 0
    %746 = vmatprep.subr.bf16.mxu0 0
    %747 = vmatpush1.bf16.msra.mxu0 0
    %748 = vmatprep.subr.bf16.mxu0 0
    %749 = vmatpush1.bf16.msra.mxu0 0
    %750 = vmatprep.subr.bf16.mxu0 0
    %751 = vmatpush1.bf16.msra.mxu0 0
    %752 = vmatprep.subr.bf16.mxu0 0
    %753 = vmatpush1.bf16.msra.mxu0 0
    %754 = vmatprep.subr.bf16.mxu0 0
    %755 = vmatpush1.bf16.msra.mxu0 0
    %756 = vmatprep.mubr.bf16.mxu0 0
    %757 = vmatmul.mubr.bf16.gmra.mrb[0].mxu0 %v511
    %v758 = vpop.f32.mrb[0].mxu0
    %v759 = vadd.f32 %v719, %v758
    %v760 = vpop.f32.mrb[0].mxu0
    %v761 = vpop.f32.mrb[0].mxu0
    %v762 = vpop.f32.mrb[0].mxu0
    %763 = vdwg.mxu0
    %v764 = vld [vmem:[%s7] sm:$0x1]
    %v766 = vlaneseq
    %v767 = vshrl.u32 %v766, 7
    %v768 = vsub.s32 0, %v767
    %v769 = vrot.slane %v764, %v768
    %v771 = vadd.f32 %v759, %v769
    %772 = vst [vmem:[#allocation11] sm:$0xff] %v771
    // Predicated region
    $region54: #{tpu_custom_call.1} parent=1 // pred_check
      _
    $region55: #{tpu_custom_call.1} parent=1 // pred_check_branch
      %774 = sbr.rel (0) target = $region57
    $region56: #{tpu_custom_call.1} parent=1 // pred_region
      %s776 = ssub.s32 128, 128
      %777 = vsyncadd [#allocation4], %s776
      %s779 = sshll.u32 [#allocation11], 4
      %s780 = int_to_ptr.vmem [resolvable:$true] %s779
      %782 = dma.vmem_to_hbm [thread:$0]  %s780, 128, %s8, [#allocation4]
    $region57: #{tpu_custom_call.1} parent=1 // pred_fallthru
      _
    // Predicated region
    $region58: #{tpu_custom_call.1} parent=1 // pred_check
      _
    $region59: #{tpu_custom_call.1} parent=1 // pred_check_branch
      %784 = sbr.rel (0) target = $region61
    $region60: #{tpu_custom_call.1} parent=1 // pred_region
      %785 = dma.done [#allocation4], 128
    $region61: #{tpu_custom_call.1} parent=1 // pred_fallthru
      _
    %786 = vsyncpa [#allocation3], 1
    %787 = vsyncpa [#allocation6], 1
    %788 = vsyncpa [#allocation9], 1
    %789 = vsyncpa [#allocation4], 1

</llo_original>
